<compile_context>
chip_gen: v5e
topology: v5e:2x2
jax: 0.10.0
libtpu: 0.0.40
codegen_flags: <defaults>
</compile_context>

<pallas_src>
import jax
import jax.numpy as jnp
from jax import lax
from jax.experimental import pallas as pl
from jax.experimental.pallas import tpu as pltpu


def _round_up(x, m):
    return ((x + m - 1) // m) * m


def _mlp_kernel(u_ref, t_ref, w1u_ref, w1t_ref, b1_ref, w2r_ref, b2_ref, o_ref):
    # u/t: (TB, E)   w1u/w1t: (E, H)   b1: (1, H)   w2r: (1, H)   b2: (1, 1)
    # o:   (1, TB)   -- lane-dense output row
    h = jnp.dot(u_ref[...], w1u_ref[...], preferred_element_type=jnp.float32)
    h = h + jnp.dot(t_ref[...], w1t_ref[...], preferred_element_type=jnp.float32)
    h = jnp.maximum(h + b1_ref[...], 0.0)                 # ReLU, f32, (TB, H)
    # Linear(H -> 1): contract H of w2_row (1, H) with H of h (TB, H) -> (1, TB).
    # Result lands lane-dense directly; MXU is otherwise idle in this
    # HBM-bound kernel, so the extra pass is free.
    y = lax.dot_general(w2r_ref[...], h,
                        dimension_numbers=(((1,), (1,)), ((), ())),
                        preferred_element_type=jnp.float32)   # (1, TB)
    o_ref[...] = jax.nn.sigmoid(y + b2_ref[...])          # Sigmoid, broadcast b2


def interaction_mlp(u, t, w1u, w1t, b1, w2row, b2, *, tb=None):
    """u, t: (B, E) -> (B,) float32 scores via a batch-tiled Pallas kernel."""
    B, E = u.shape
    H = w1u.shape[1]

    if tb is None:
        # Lane-dense output => TB must be a multiple of 128.  Cap TB so the
        # double-buffered (TB, E) input slabs stay far under every
        # generation's scoped-VMEM budget (v5e 16 MiB ... v7x 32 MiB default).
        tb = min(8192, _round_up(B, 128))
    b_pad = _round_up(B, tb)
    if b_pad != B:
        pad = b_pad - B
        u = jnp.pad(u, ((0, pad), (0, 0)))
        t = jnp.pad(t, ((0, pad), (0, 0)))
    num_tiles = b_pad // tb

    out = pl.pallas_call(
        _mlp_kernel,
        out_shape=jax.ShapeDtypeStruct((1, b_pad), jnp.float32),
        grid=(num_tiles,),
        in_specs=[
            pl.BlockSpec((tb, E), lambda i: (i, 0)),   # u tile (pipelined)
            pl.BlockSpec((tb, E), lambda i: (i, 0)),   # t tile (pipelined)
            pl.BlockSpec((E, H), lambda i: (0, 0)),    # w1_u  (VMEM-resident)
            pl.BlockSpec((E, H), lambda i: (0, 0)),    # w1_t  (VMEM-resident)
            pl.BlockSpec((1, H), lambda i: (0, 0)),    # b1    (VMEM-resident)
            pl.BlockSpec((1, H), lambda i: (0, 0)),    # w2 row (VMEM-resident)
            pl.BlockSpec((1, 1), lambda i: (0, 0)),    # b2    (VMEM-resident)
        ],
        out_specs=pl.BlockSpec((1, tb), lambda i: (0, i)),  # lane-dense row
        compiler_params=pltpu.CompilerParams(
            dimension_semantics=("parallel",)),
    )(u, t, w1u, w1t, b1, w2row, b2)
    return out[0, :B]   # drop batch padding (padded rows are garbage-but-harmless)


def binary_recommender_forward(params, user, track, *, compute_dtype=jnp.float32):
    """Full forward pass. user, track: int32 (B,).  Returns (B,) float32."""
    E = params["user_emb"].shape[1]
    # Embedding gathers: thin JAX glue (tables are tiny; hot path is the MLP).
    u = jnp.take(params["user_emb"], user, axis=0).astype(compute_dtype)    # (B, E)
    t = jnp.take(params["track_emb"], track, axis=0).astype(compute_dtype)  # (B, E)
    # Split w1 so the (B, 2E) concat never materializes in HBM.
    w1u = params["w1"][:E].astype(compute_dtype)   # (E, H)
    w1t = params["w1"][E:].astype(compute_dtype)   # (E, H)
    w2row = params["w2"].T                         # (1, H) f32
    return interaction_mlp(u, t, w1u, w1t, params["b1"], w2row, params["b2"])


def init_params(key, num_users, num_tracks, embedding_dim=32, hidden=64):
    ks = jax.random.split(key, 6)
    fan1 = embedding_dim * 2
    fan2 = hidden
    # nn.Embedding default: N(0, 1); nn.Linear default: U(-1/sqrt(fan_in), 1/sqrt(fan_in))
    return {
        "user_emb": jax.random.normal(ks[0], (num_users, embedding_dim), jnp.float32),
        "track_emb": jax.random.normal(ks[1], (num_tracks, embedding_dim), jnp.float32),
        "w1": jax.random.uniform(ks[2], (fan1, hidden), jnp.float32,
                                 -1.0 / jnp.sqrt(fan1), 1.0 / jnp.sqrt(fan1)),
        "b1": jax.random.uniform(ks[3], (1, hidden), jnp.float32,
                                 -1.0 / jnp.sqrt(fan1), 1.0 / jnp.sqrt(fan1)),
        "w2": jax.random.uniform(ks[4], (fan2, 1), jnp.float32,
                                 -1.0 / jnp.sqrt(fan2), 1.0 / jnp.sqrt(fan2)),
        "b2": jax.random.uniform(ks[5], (1, 1), jnp.float32,
                                 -1.0 / jnp.sqrt(fan2), 1.0 / jnp.sqrt(fan2)),
    }


if __name__ == "__main__":
    key = jax.random.PRNGKey(0)
    num_users, num_tracks, embedding_dim, batch = 100, 200, 32, 8

    pkey, ukey, tkey = jax.random.split(key, 3)
    params = init_params(pkey, num_users, num_tracks, embedding_dim)
    user = jax.random.randint(ukey, (batch,), 0, num_users, dtype=jnp.int32)
    track = jax.random.randint(tkey, (batch,), 0, num_tracks, dtype=jnp.int32)

    # f32 path (bit-level compatible with the reference up to summation order).
    out = binary_recommender_forward(params, user, track)
    out = jax.block_until_ready(out)

    # bf16 matmul-input path (bandwidth-optimized for v6e/v7x; looser tolerance).
    out_bf16 = binary_recommender_forward(params, user, track,
                                          compute_dtype=jnp.bfloat16)
    out_bf16 = jax.block_until_ready(out_bf16)

    # Reference check in plain JAX.
    u = jnp.take(params["user_emb"], user, axis=0)
    t = jnp.take(params["track_emb"], track, axis=0)
    x = jnp.concatenate([u, t], axis=1)
    h = jnp.maximum(x @ params["w1"] + params["b1"], 0.0)
    ref = jax.nn.sigmoid(h @ params["w2"] + params["b2"]).squeeze(-1)

    assert out.shape == (batch,), out.shape
    assert jnp.allclose(out, ref, atol=1e-5, rtol=1e-5), (out, ref)
    assert jnp.allclose(out_bf16, ref, atol=3e-2), (out_bf16, ref)
    print("KERNEL_OK")
</pallas_src>

<mosaic_0001>
module attributes {stable_mosaic.version = 11 : i64} {
  func.func @_mlp_kernel(%arg0: i32, %arg1: memref<128x32xf32, #tpu.memory_space<vmem>>, %arg2: memref<128x32xf32, #tpu.memory_space<vmem>>, %arg3: memref<32x64xf32, #tpu.memory_space<vmem>>, %arg4: memref<32x64xf32, #tpu.memory_space<vmem>>, %arg5: memref<1x64xf32, #tpu.memory_space<vmem>>, %arg6: memref<1x64xf32, #tpu.memory_space<vmem>>, %arg7: memref<1x1xf32, #tpu.memory_space<vmem>>, %arg8: memref<1x128xf32, #tpu.memory_space<vmem>>) attributes {dimension_semantics = [#tpu.dimension_semantics<parallel>], iteration_bounds = array<i64: 1>, scalar_prefetch = 0 : i64, scratch_operands = 0 : i64, tpu.core_type = #tpu.core_type<tc>, window_params = [{transform_indices = @transform_0, window_bounds = array<i64: 128, 32>}, {transform_indices = @transform_1, window_bounds = array<i64: 128, 32>}, {pipeline_mode = #tpu.pipeline_mode<synchronous>, transform_indices = @transform_2, window_bounds = array<i64: 32, 64>}, {pipeline_mode = #tpu.pipeline_mode<synchronous>, transform_indices = @transform_3, window_bounds = array<i64: 32, 64>}, {pipeline_mode = #tpu.pipeline_mode<synchronous>, transform_indices = @transform_4, window_bounds = array<i64: 1, 64>}, {pipeline_mode = #tpu.pipeline_mode<synchronous>, transform_indices = @transform_5, window_bounds = array<i64: 1, 64>}, {pipeline_mode = #tpu.pipeline_mode<synchronous>, transform_indices = @transform_6, window_bounds = array<i64: 1, 1>}, {transform_indices = @transform_7, window_bounds = array<i64: 1, 128>}]} {
    %c0 = arith.constant 0 : index
    %c0_0 = arith.constant 0 : index
    %0 = vector.load %arg1[%c0, %c0_0] : memref<128x32xf32, #tpu.memory_space<vmem>>, vector<128x32xf32>
    %c0_1 = arith.constant 0 : index
    %c0_2 = arith.constant 0 : index
    %1 = vector.load %arg3[%c0_1, %c0_2] : memref<32x64xf32, #tpu.memory_space<vmem>>, vector<32x64xf32>
    %cst = arith.constant dense<0.000000e+00> : vector<128x64xf32>
    %2 = tpu.matmul %0, %1, %cst {dimension_numbers = #tpu.dot_dimension_numbers<[1], [0], [0], [1], [0, 0, 1, 1], [], []>} : vector<128x32xf32>, vector<32x64xf32>, vector<128x64xf32> -> vector<128x64xf32>
    %c0_3 = arith.constant 0 : index
    %c0_4 = arith.constant 0 : index
    %3 = vector.load %arg2[%c0_3, %c0_4] : memref<128x32xf32, #tpu.memory_space<vmem>>, vector<128x32xf32>
    %c0_5 = arith.constant 0 : index
    %c0_6 = arith.constant 0 : index
    %4 = vector.load %arg4[%c0_5, %c0_6] : memref<32x64xf32, #tpu.memory_space<vmem>>, vector<32x64xf32>
    %cst_7 = arith.constant dense<0.000000e+00> : vector<128x64xf32>
    %5 = tpu.matmul %3, %4, %cst_7 {dimension_numbers = #tpu.dot_dimension_numbers<[1], [0], [0], [1], [0, 0, 1, 1], [], []>} : vector<128x32xf32>, vector<32x64xf32>, vector<128x64xf32> -> vector<128x64xf32>
    %6 = arith.addf %2, %5 : vector<128x64xf32>
    %c0_8 = arith.constant 0 : index
    %c0_9 = arith.constant 0 : index
    %7 = vector.load %arg5[%c0_8, %c0_9] : memref<1x64xf32, #tpu.memory_space<vmem>>, vector<1x64xf32>
    %8 = vector.broadcast %7 : vector<1x64xf32> to vector<128x64xf32>
    %9 = arith.addf %6, %8 : vector<128x64xf32>
    %cst_10 = arith.constant 0.000000e+00 : f32
    %10 = vector.broadcast %cst_10 : f32 to vector<128x64xf32>
    %11 = arith.maximumf %9, %10 : vector<128x64xf32>
    %c0_11 = arith.constant 0 : index
    %c0_12 = arith.constant 0 : index
    %12 = vector.load %arg6[%c0_11, %c0_12] : memref<1x64xf32, #tpu.memory_space<vmem>>, vector<1x64xf32>
    %cst_13 = arith.constant dense<0.000000e+00> : vector<1x128xf32>
    %13 = tpu.matmul %12, %11, %cst_13 {dimension_numbers = #tpu.dot_dimension_numbers<[1], [1], [0], [0], [0, 0, 1, 0], [], []>} : vector<1x64xf32>, vector<128x64xf32>, vector<1x128xf32> -> vector<1x128xf32>
    %c0_14 = arith.constant 0 : index
    %c0_15 = arith.constant 0 : index
    %14 = vector.load %arg7[%c0_14, %c0_15] : memref<1x1xf32, #tpu.memory_space<vmem>>, vector<1x1xf32>
    %15 = vector.broadcast %14 : vector<1x1xf32> to vector<1x128xf32>
    %16 = arith.addf %13, %15 : vector<1x128xf32>
    %17 = arith.negf %16 : vector<1x128xf32>
    %18 = math.exp %17 : vector<1x128xf32>
    %cst_16 = arith.constant 1.000000e+00 : f32
    %19 = vector.broadcast %cst_16 : f32 to vector<1x128xf32>
    %20 = arith.addf %19, %18 : vector<1x128xf32>
    %21 = arith.divf %19, %20 : vector<1x128xf32>
    %c0_17 = arith.constant 0 : index
    %c0_18 = arith.constant 0 : index
    %22 = vector.load %arg8[%c0_17, %c0_18] : memref<1x128xf32, #tpu.memory_space<vmem>>, vector<1x128xf32>
    tpu.vector_store %arg8[%c0_17, %c0_18], %21 {strides = array<i32>} : memref<1x128xf32, #tpu.memory_space<vmem>>, vector<1x128xf32>,
    return
  }
  func.func @transform_0(%arg0: i32) -> (i32, i32) {
    %c0_i32 = arith.constant 0 : i32
    %c0_i32_0 = arith.constant 0 : i32
    return %arg0, %c0_i32 : i32, i32
  }
  func.func @transform_1(%arg0: i32) -> (i32, i32) {
    %c0_i32 = arith.constant 0 : i32
    %c0_i32_0 = arith.constant 0 : i32
    return %arg0, %c0_i32 : i32, i32
  }
  func.func @transform_2(%arg0: i32) -> (i32, i32) {
    %c0_i32 = arith.constant 0 : i32
    %c0_i32_0 = arith.constant 0 : i32
    %c0_i32_1 = arith.constant 0 : i32
    return %c0_i32, %c0_i32_0 : i32, i32
  }
  func.func @transform_3(%arg0: i32) -> (i32, i32) {
    %c0_i32 = arith.constant 0 : i32
    %c0_i32_0 = arith.constant 0 : i32
    %c0_i32_1 = arith.constant 0 : i32
    return %c0_i32, %c0_i32_0 : i32, i32
  }
  func.func @transform_4(%arg0: i32) -> (i32, i32) {
    %c0_i32 = arith.constant 0 : i32
    %c0_i32_0 = arith.constant 0 : i32
    %c0_i32_1 = arith.constant 0 : i32
    return %c0_i32, %c0_i32_0 : i32, i32
  }
  func.func @transform_5(%arg0: i32) -> (i32, i32) {
    %c0_i32 = arith.constant 0 : i32
    %c0_i32_0 = arith.constant 0 : i32
    %c0_i32_1 = arith.constant 0 : i32
    return %c0_i32, %c0_i32_0 : i32, i32
  }
  func.func @transform_6(%arg0: i32) -> (i32, i32) {
    %c0_i32 = arith.constant 0 : i32
    %c0_i32_0 = arith.constant 0 : i32
    %c0_i32_1 = arith.constant 0 : i32
    return %c0_i32, %c0_i32_0 : i32, i32
  }
  func.func @transform_7(%arg0: i32) -> (i32, i32) {
    %c0_i32 = arith.constant 0 : i32
    %c0_i32_0 = arith.constant 0 : i32
    return %c0_i32, %arg0 : i32, i32
  }
}

</mosaic_0001>

<llo_original>
// kernel: tpu_custom_call.1
$region0: #{tpu_custom_call.1}
  #allocation0 [shape = 'u32[]', space=smem, size = 0x4, offset = 0x4, fixed_abs, tag = 'smem constant byte address 0x4 - core index']
  #allocation1 [shape = 'u32[72,128]{1,0:T(1,128)}', space=vmem, size = 0x9000, scoped, tag = 'internal scratch']
  #allocation2 [shape = 'f32[1,1]{1,0:T(1,128)S(1)}', space=vmem, size = 0x200, scoped, tag = 'scoped memory for tpu_custom_call.1']
  %s0 = inlined_call_operand.vmem [shape: f32[128,32], index: 0, kind: input, shape index: {}]
  %s1 = inlined_call_operand.vmem [shape: f32[128,32], index: 1, kind: input, shape index: {}]
  %s2 = inlined_call_operand.vmem [shape: f32[32,64], index: 2, kind: input, shape index: {}]
  %s3 = inlined_call_operand.vmem [shape: f32[32,64], index: 3, kind: input, shape index: {}]
  %s4 = inlined_call_operand.vmem [shape: f32[1,64], index: 4, kind: input, shape index: {}]
  %s5 = inlined_call_operand.vmem [shape: f32[1,64], index: 5, kind: input, shape index: {}]
  %s6 = inlined_call_operand.<no memory space> [shape: f32[1,1], index: 6, kind: input, shape index: {}]
  %s7 = inlined_call_operand.hbm [shape: f32[1,128], index: 7, kind: output, shape index: {}]
  %s8 = sld [smem:[#allocation0]]
  $region38: #{tpu_custom_call.1} parent=0
    _
  %s10 = ssub.s32 1, %s8
  %s11 = scalar_select 0, %s10, %s8
  %v12 = vstv %s6
  %13 = vst [vmem:[#allocation2] sm:$0x1] %v12
  $region1: #{tpu_custom_call.1} parent=0
    #allocation3 [shape = 'u8[512]{0}', space=vmem, size = 0x400, scoped, tag = 'output window, operand 0, single buffered']
    #allocation4 [shape = 's32[1]{0}', space=sflag, size = 0x4, scoped, tag = 'scoped memory for tpu_custom_call.1']
    %14 = vsyncpa [#allocation4], 0
    // Predicated region
    $region2: #{tpu_custom_call.1} parent=1 // pred_check
      _
    $region3: #{tpu_custom_call.1} parent=1 // pred_check_branch
      %16 = sbr.rel (0) target = $region5
    $region4: #{tpu_custom_call.1} parent=1 // pred_region
      _
    $region5: #{tpu_custom_call.1} parent=1 // pred_fallthru
      _
    // Predicated region
    $region6: #{tpu_custom_call.1} parent=1 // pred_check
      _
    $region7: #{tpu_custom_call.1} parent=1 // pred_check_branch
      %18 = sbr.rel (0) target = $region9
    $region8: #{tpu_custom_call.1} parent=1 // pred_region
      _
    $region9: #{tpu_custom_call.1} parent=1 // pred_fallthru
      _
    // Predicated region
    $region10: #{tpu_custom_call.1} parent=1 // pred_check
      _
    $region11: #{tpu_custom_call.1} parent=1 // pred_check_branch
      %20 = sbr.rel (0) target = $region13
    $region12: #{tpu_custom_call.1} parent=1 // pred_region
      _
    $region13: #{tpu_custom_call.1} parent=1 // pred_fallthru
      _
    // Predicated region
    $region14: #{tpu_custom_call.1} parent=1 // pred_check
      _
    $region15: #{tpu_custom_call.1} parent=1 // pred_check_branch
      %22 = sbr.rel (0) target = $region17
    $region16: #{tpu_custom_call.1} parent=1 // pred_region
      _
    $region17: #{tpu_custom_call.1} parent=1 // pred_fallthru
      _
    // Predicated region
    $region18: #{tpu_custom_call.1} parent=1 // pred_check
      _
    $region19: #{tpu_custom_call.1} parent=1 // pred_check_branch
      %24 = sbr.rel (0) target = $region21
    $region20: #{tpu_custom_call.1} parent=1 // pred_region
      _
    $region21: #{tpu_custom_call.1} parent=1 // pred_fallthru
      _
    // Predicated region
    $region22: #{tpu_custom_call.1} parent=1 // pred_check
      _
    $region23: #{tpu_custom_call.1} parent=1 // pred_check_branch
      %26 = sbr.rel (0) target = $region25
    $region24: #{tpu_custom_call.1} parent=1 // pred_region
      _
    $region25: #{tpu_custom_call.1} parent=1 // pred_fallthru
      _
    // Predicated region
    $region26: #{tpu_custom_call.1} parent=1 // pred_check
      _
    $region27: #{tpu_custom_call.1} parent=1 // pred_check_branch
      %28 = sbr.rel (0) target = $region29
    $region28: #{tpu_custom_call.1} parent=1 // pred_region
      _
    $region29: #{tpu_custom_call.1} parent=1 // pred_fallthru
      _
    %v29 = vld [vmem:[%s0] sm:$0xff]
    %v30 = vld [vmem:[%s0 + $0x8] sm:$0xff]
    %v31 = vld [vmem:[%s0 + $0x10] sm:$0xff]
    %v32 = vld [vmem:[%s0 + $0x18] sm:$0xff]
    %v33 = vld [vmem:[%s0 + $0x20] sm:$0xff]
    %v34 = vld [vmem:[%s0 + $0x28] sm:$0xff]
    %v35 = vld [vmem:[%s0 + $0x30] sm:$0xff]
    %v36 = vld [vmem:[%s0 + $0x38] sm:$0xff]
    %v37 = vld [vmem:[%s0 + $0x40] sm:$0xff]
    %v38 = vld [vmem:[%s0 + $0x48] sm:$0xff]
    %v39 = vld [vmem:[%s0 + $0x50] sm:$0xff]
    %v40 = vld [vmem:[%s0 + $0x58] sm:$0xff]
    %v41 = vld [vmem:[%s0 + $0x60] sm:$0xff]
    %v42 = vld [vmem:[%s0 + $0x68] sm:$0xff]
    %v43 = vld [vmem:[%s0 + $0x70] sm:$0xff]
    %v44 = vld [vmem:[%s0 + $0x78] sm:$0xff]
    %v45 = vld [vmem:[%s2] sm:$0xff]
    %v46 = vld [vmem:[%s2 + $0x8] sm:$0xff]
    %v47 = vld [vmem:[%s2 + $0x10] sm:$0xff]
    %v48 = vld [vmem:[%s2 + $0x18] sm:$0xff]
    %v49 = vld [vmem:[%s1] sm:$0xff]
    %v50 = vld [vmem:[%s1 + $0x8] sm:$0xff]
    %v51 = vld [vmem:[%s1 + $0x10] sm:$0xff]
    %v52 = vld [vmem:[%s1 + $0x18] sm:$0xff]
    %v53 = vld [vmem:[%s1 + $0x20] sm:$0xff]
    %v54 = vld [vmem:[%s1 + $0x28] sm:$0xff]
    %v55 = vld [vmem:[%s1 + $0x30] sm:$0xff]
    %v56 = vld [vmem:[%s1 + $0x38] sm:$0xff]
    %v57 = vld [vmem:[%s1 + $0x40] sm:$0xff]
    %v58 = vld [vmem:[%s1 + $0x48] sm:$0xff]
    %v59 = vld [vmem:[%s1 + $0x50] sm:$0xff]
    %v60 = vld [vmem:[%s1 + $0x58] sm:$0xff]
    %v61 = vld [vmem:[%s1 + $0x60] sm:$0xff]
    %v62 = vld [vmem:[%s1 + $0x68] sm:$0xff]
    %v63 = vld [vmem:[%s1 + $0x70] sm:$0xff]
    %v64 = vld [vmem:[%s1 + $0x78] sm:$0xff]
    %v65 = vld [vmem:[%s3] sm:$0xff]
    %v66 = vld [vmem:[%s3 + $0x8] sm:$0xff]
    %v67 = vld [vmem:[%s3 + $0x10] sm:$0xff]
    %v68 = vld [vmem:[%s3 + $0x18] sm:$0xff]
    %vm69 = vcmask 261120
    %v71 = vsel %vm69, %v49, 0
    %v74 = vsel %vm69, %v50, 0
    %v77 = vsel %vm69, %v51, 0
    %v80 = vsel %vm69, %v52, 0
    %v83 = vsel %vm69, %v53, 0
    %v86 = vsel %vm69, %v54, 0
    %v89 = vsel %vm69, %v55, 0
    %v92 = vsel %vm69, %v56, 0
    %v95 = vsel %vm69, %v57, 0
    %v98 = vsel %vm69, %v58, 0
    %v101 = vsel %vm69, %v59, 0
    %v104 = vsel %vm69, %v60, 0
    %v107 = vsel %vm69, %v61, 0
    %v110 = vsel %vm69, %v62, 0
    %v113 = vsel %vm69, %v63, 0
    %v116 = vsel %vm69, %v64, 0
    %118 = vmatpush.msra.mxu0 0.0
    %119 = vmatpush.msra.mxu0 0.0
    %120 = vmatpush.msra.mxu0 0.0
    %121 = vmatpush.msra.mxu0 0.0
    %122 = vmatpush.msra.mxu0 0.0
    %123 = vmatpush.msra.mxu0 0.0
    %124 = vmatpush.msra.mxu0 0.0
    %125 = vmatpush.msra.mxu0 0.0
    %126 = vmatpush.msra.mxu0 0.0
    %127 = vmatpush.msra.mxu0 0.0
    %128 = vmatpush.msra.mxu0 0.0
    %129 = vmatpush.msra.mxu0 0.0
    %130 = vmatpush.msra.mxu0 %v68
    %131 = vmatpush.msra.mxu0 %v67
    %132 = vmatpush.msra.mxu0 %v66
    %133 = vmatpush.msra.mxu0 %v65
    %134 = vmatmul.f32.gmra.mxu0 %v71
    %v135 = vpop.f32.mrf.mxu0
    %v136 = vadd.f32 0.0, %v135
    %137 = vmatmul.f32.gmra.mxu0 %v74
    %v138 = vpop.f32.mrf.mxu0
    %v139 = vadd.f32 0.0, %v138
    %140 = vmatmul.f32.gmra.mxu0 %v77
    %v141 = vpop.f32.mrf.mxu0
    %v142 = vadd.f32 0.0, %v141
    %143 = vmatmul.f32.gmra.mxu0 %v80
    %v144 = vpop.f32.mrf.mxu0
    %v145 = vadd.f32 0.0, %v144
    %146 = vmatmul.f32.gmra.mxu0 %v83
    %v147 = vpop.f32.mrf.mxu0
    %v148 = vadd.f32 0.0, %v147
    %149 = vmatmul.f32.gmra.mxu0 %v86
    %v150 = vpop.f32.mrf.mxu0
    %v151 = vadd.f32 0.0, %v150
    %152 = vmatmul.f32.gmra.mxu0 %v89
    %v153 = vpop.f32.mrf.mxu0
    %v154 = vadd.f32 0.0, %v153
    %155 = vmatmul.f32.gmra.mxu0 %v92
    %v156 = vpop.f32.mrf.mxu0
    %v157 = vadd.f32 0.0, %v156
    %158 = vmatmul.f32.gmra.mxu0 %v95
    %v159 = vpop.f32.mrf.mxu0
    %v160 = vadd.f32 0.0, %v159
    %161 = vmatmul.f32.gmra.mxu0 %v98
    %v162 = vpop.f32.mrf.mxu0
    %v163 = vadd.f32 0.0, %v162
    %164 = vmatmul.f32.gmra.mxu0 %v101
    %v165 = vpop.f32.mrf.mxu0
    %v166 = vadd.f32 0.0, %v165
    %167 = vmatmul.f32.gmra.mxu0 %v104
    %v168 = vpop.f32.mrf.mxu0
    %v169 = vadd.f32 0.0, %v168
    %170 = vmatmul.f32.gmra.mxu0 %v107
    %v171 = vpop.f32.mrf.mxu0
    %v172 = vadd.f32 0.0, %v171
    %173 = vmatmul.f32.gmra.mxu0 %v110
    %v174 = vpop.f32.mrf.mxu0
    %v175 = vadd.f32 0.0, %v174
    %176 = vmatmul.f32.gmra.mxu0 %v113
    %v177 = vpop.f32.mrf.mxu0
    %v178 = vadd.f32 0.0, %v177
    %179 = vmatmul.f32.gmra.mxu0 %v116
    %v180 = vpop.f32.mrf.mxu0
    %v181 = vadd.f32 0.0, %v180
    %182 = vdwg.mxu0
    %v184 = vsel %vm69, %v29, 0
    %v187 = vsel %vm69, %v30, 0
    %v190 = vsel %vm69, %v31, 0
    %v193 = vsel %vm69, %v32, 0
    %v196 = vsel %vm69, %v33, 0
    %v199 = vsel %vm69, %v34, 0
    %v202 = vsel %vm69, %v35, 0
    %v205 = vsel %vm69, %v36, 0
    %v208 = vsel %vm69, %v37, 0
    %v211 = vsel %vm69, %v38, 0
    %v214 = vsel %vm69, %v39, 0
    %v217 = vsel %vm69, %v40, 0
    %v220 = vsel %vm69, %v41, 0
    %v223 = vsel %vm69, %v42, 0
    %v226 = vsel %vm69, %v43, 0
    %v229 = vsel %vm69, %v44, 0
    %231 = vmatpush.msra.mxu0 0.0
    %232 = vmatpush.msra.mxu0 0.0
    %233 = vmatpush.msra.mxu0 0.0
    %234 = vmatpush.msra.mxu0 0.0
    %235 = vmatpush.msra.mxu0 0.0
    %236 = vmatpush.msra.mxu0 0.0
    %237 = vmatpush.msra.mxu0 0.0
    %238 = vmatpush.msra.mxu0 0.0
    %239 = vmatpush.msra.mxu0 0.0
    %240 = vmatpush.msra.mxu0 0.0
    %241 = vmatpush.msra.mxu0 0.0
    %242 = vmatpush.msra.mxu0 0.0
    %243 = vmatpush.msra.mxu0 %v48
    %244 = vmatpush.msra.mxu0 %v47
    %245 = vmatpush.msra.mxu0 %v46
    %246 = vmatpush.msra.mxu0 %v45
    %247 = vmatmul.f32.gmra.mxu0 %v184
    %v248 = vpop.f32.mrf.mxu0
    %v249 = vadd.f32 %v136, %v248
    %250 = vmatmul.f32.gmra.mxu0 %v187
    %v251 = vpop.f32.mrf.mxu0
    %v252 = vadd.f32 %v139, %v251
    %253 = vmatmul.f32.gmra.mxu0 %v190
    %v254 = vpop.f32.mrf.mxu0
    %v255 = vadd.f32 %v142, %v254
    %256 = vmatmul.f32.gmra.mxu0 %v193
    %v257 = vpop.f32.mrf.mxu0
    %v258 = vadd.f32 %v145, %v257
    %259 = vmatmul.f32.gmra.mxu0 %v196
    %v260 = vpop.f32.mrf.mxu0
    %v261 = vadd.f32 %v148, %v260
    %262 = vmatmul.f32.gmra.mxu0 %v199
    %v263 = vpop.f32.mrf.mxu0
    %v264 = vadd.f32 %v151, %v263
    %265 = vmatmul.f32.gmra.mxu0 %v202
    %v266 = vpop.f32.mrf.mxu0
    %v267 = vadd.f32 %v154, %v266
    %268 = vmatmul.f32.gmra.mxu0 %v205
    %v269 = vpop.f32.mrf.mxu0
    %v270 = vadd.f32 %v157, %v269
    %271 = vmatmul.f32.gmra.mxu0 %v208
    %v272 = vpop.f32.mrf.mxu0
    %v273 = vadd.f32 %v160, %v272
    %274 = vmatmul.f32.gmra.mxu0 %v211
    %v275 = vpop.f32.mrf.mxu0
    %v276 = vadd.f32 %v163, %v275
    %277 = vmatmul.f32.gmra.mxu0 %v214
    %v278 = vpop.f32.mrf.mxu0
    %v279 = vadd.f32 %v166, %v278
    %280 = vmatmul.f32.gmra.mxu0 %v217
    %v281 = vpop.f32.mrf.mxu0
    %v282 = vadd.f32 %v169, %v281
    %283 = vmatmul.f32.gmra.mxu0 %v220
    %v284 = vpop.f32.mrf.mxu0
    %v285 = vadd.f32 %v172, %v284
    %286 = vmatmul.f32.gmra.mxu0 %v223
    %v287 = vpop.f32.mrf.mxu0
    %v288 = vadd.f32 %v175, %v287
    %289 = vmatmul.f32.gmra.mxu0 %v226
    %v290 = vpop.f32.mrf.mxu0
    %v291 = vadd.f32 %v178, %v290
    %292 = vmatmul.f32.gmra.mxu0 %v229
    %v293 = vpop.f32.mrf.mxu0
    %v294 = vadd.f32 %v181, %v293
    %295 = vdwg.mxu0
    %v296 = vld [vmem:[%s4] sm:$0x1]
    %v298 = vperm.slane %v296, 0
    %v300 = vadd.f32 %v249, %v298
    %v301 = vadd.f32 %v252, %v298
    %v302 = vadd.f32 %v255, %v298
    %v303 = vadd.f32 %v258, %v298
    %v304 = vadd.f32 %v261, %v298
    %v305 = vadd.f32 %v264, %v298
    %v306 = vadd.f32 %v267, %v298
    %v307 = vadd.f32 %v270, %v298
    %v308 = vadd.f32 %v273, %v298
    %v309 = vadd.f32 %v276, %v298
    %v310 = vadd.f32 %v279, %v298
    %v311 = vadd.f32 %v282, %v298
    %v312 = vadd.f32 %v285, %v298
    %v313 = vadd.f32 %v288, %v298
    %v314 = vadd.f32 %v291, %v298
    %v315 = vadd.f32 %v294, %v298
    %v316 = vmax.f32 %v300, 0.0
    %v317 = vmax.f32 %v301, 0.0
    %v318 = vmax.f32 %v302, 0.0
    %v319 = vmax.f32 %v303, 0.0
    %v320 = vmax.f32 %v304, 0.0
    %v321 = vmax.f32 %v305, 0.0
    %v322 = vmax.f32 %v306, 0.0
    %v323 = vmax.f32 %v307, 0.0
    %v324 = vmax.f32 %v308, 0.0
    %v325 = vmax.f32 %v309, 0.0
    %v326 = vmax.f32 %v310, 0.0
    %v327 = vmax.f32 %v311, 0.0
    %v328 = vmax.f32 %v312, 0.0
    %v329 = vmax.f32 %v313, 0.0
    %v330 = vmax.f32 %v314, 0.0
    %v331 = vmax.f32 %v315, 0.0
    %v332 = vld [vmem:[%s5] sm:$0x1]
    %v333 = vld [vmem:[#allocation2] sm:$0x1]
    %335 = vset.pattern.permute.xlu0 0
    %336 = vperm.xlu0 %335, %v333
    %v337 = vpop.permute.xlu0 %336
    %v339 = vperm.slane %v337, 0
    %vm340 = vcmask 523264
    %v342 = vsel %vm340, %v332, 0
    %v345 = vsel %vm340, %v316, 0
    %v348 = vsel %vm340, %v317, 0
    %v351 = vsel %vm340, %v318, 0
    %v354 = vsel %vm340, %v319, 0
    %v357 = vsel %vm340, %v320, 0
    %v360 = vsel %vm340, %v321, 0
    %v363 = vsel %vm340, %v322, 0
    %v366 = vsel %vm340, %v323, 0
    %v369 = vsel %vm340, %v324, 0
    %v372 = vsel %vm340, %v325, 0
    %v375 = vsel %vm340, %v326, 0
    %v378 = vsel %vm340, %v327, 0
    %v381 = vsel %vm340, %v328, 0
    %v384 = vsel %vm340, %v329, 0
    %v387 = vsel %vm340, %v330, 0
    %v390 = vsel %vm340, %v331, 0
    %392 = vmatpush.xpose.msra.mxu0 %v390
    %393 = vmatpush.xpose.msra.mxu0 %v387
    %394 = vmatpush.xpose.msra.mxu0 %v384
    %395 = vmatpush.xpose.msra.mxu0 %v381
    %396 = vmatpush.xpose.msra.mxu0 %v378
    %397 = vmatpush.xpose.msra.mxu0 %v375
    %398 = vmatpush.xpose.msra.mxu0 %v372
    %399 = vmatpush.xpose.msra.mxu0 %v369
    %400 = vmatpush.xpose.msra.mxu0 %v366
    %401 = vmatpush.xpose.msra.mxu0 %v363
    %402 = vmatpush.xpose.msra.mxu0 %v360
    %403 = vmatpush.xpose.msra.mxu0 %v357
    %404 = vmatpush.xpose.msra.mxu0 %v354
    %405 = vmatpush.xpose.msra.mxu0 %v351
    %406 = vmatpush.xpose.msra.mxu0 %v348
    %407 = vmatpush.xpose.msra.mxu0 %v345
    %408 = vmatmul.f32.gmra.mxu0 %v342
    %v409 = vpop.f32.mrf.mxu0
    %v410 = vadd.f32 %v339, %v409
    %411 = vdwg.mxu0
    %v412 = vxor.u32 %v410, 2147483648
    %v413 = vmul.f32 %v412, 1.442695
    %v414 = vpow.pop %v413
    %v415 = vadd.f32 %v414, 1.0
    %v416 = vrcp.pop %v415
    %v417 = vmul.f32 %v415, %v416
    %v418 = vsub.f32 1.0, %v417
    %v419 = vmul.f32 %v416, %v418
    %v420 = vadd.f32 %v416, %v419
    %vm421 = vweird.f32 %v415
    %vm422 = vweird.f32 %v416
    %vm423 = vmor %vm421, %vm422
    %v424 = vsel %vm423, %v416, %v420
    %v425 = vand.u32 2147483647, %v415
    %vm426 = vcmp.eq.f32.partialorder %v425, 8.507059e+37
    %v427 = vand.u32 %v415, 2147483648
    %v428 = vor.u32 1.1754944e-38, %v427
    %v429 = vsel %vm426, %v428, %v424
    %v430 = vmul.f32 1.0, %v429
    %431 = vst [vmem:[#allocation3] sm:$0x1] %v430
    // Predicated region
    $region30: #{tpu_custom_call.1} parent=1 // pred_check
      _
    $region31: #{tpu_custom_call.1} parent=1 // pred_check_branch
      %433 = sbr.rel (0) target = $region33
    $region32: #{tpu_custom_call.1} parent=1 // pred_region
      %435 = vsyncadd [#allocation4], 0
      %s437 = sshll.u32 [#allocation3], 4
      %s438 = int_to_ptr.vmem [resolvable:$true] %s437
      %s439 = sshll.u32 %s7, 4
      %s440 = int_to_ptr.hbm [resolvable:$true] %s439
      %442 = dma.vmem_to_hbm [thread:$0]  %s438, 16, %s440, [#allocation4]
    $region33: #{tpu_custom_call.1} parent=1 // pred_fallthru
      _
    // Predicated region
    $region34: #{tpu_custom_call.1} parent=1 // pred_check
      _
    $region35: #{tpu_custom_call.1} parent=1 // pred_check_branch
      %444 = sbr.rel (0) target = $region37
    $region36: #{tpu_custom_call.1} parent=1 // pred_region
      %446 = dma.done [#allocation4], 16
    $region37: #{tpu_custom_call.1} parent=1 // pred_fallthru
      _
    %447 = vsyncpa [#allocation4], 1

</llo_original>
